<compile_context>
chip_gen: v6e
topology: v6e:2x2x1
jax: 0.10.0
libtpu: 0.0.40
codegen_flags: <defaults>
</compile_context>

<pallas_src>
import functools
import numpy as np
import jax
import jax.numpy as jnp
from jax.experimental import pallas as pl
from jax.experimental.pallas import tpu as pltpu


# ----------------------------------------------------------------------------
# Fused EMA kernel:  out = ema * m + p * (1 - m)   on one lane-dense pool
# ----------------------------------------------------------------------------
_LANE = 512            # lane-dense width (multiple of 128) -> unmasked stores
_MAX_TILE_ROWS = 512   # 512 * 512 * 4 B = 1 MiB / block; ~6 MiB total VMEM


def _round_up(x, m):
    return (x + m - 1) // m * m


def _choose_tiling(total_elems, lane=_LANE):
    """Pick (padded_rows, tile_rows) for the fused EMA pool.

    Biggest lane-dense tile that keeps 6 x tile_bytes well under the smallest
    scoped-VMEM default (v5e: 16 MiB), while keeping >= 2 grid steps whenever
    possible so v7x's two TensorCores can shard the 'parallel' axis.
    """
    rows = -(-total_elems // lane)               # ceil div
    if rows <= 8:
        tile_rows = 8                            # tiny pool: single 8-row tile
    elif rows <= 2 * _MAX_TILE_ROWS:
        tile_rows = _round_up(-(-rows // 2), 8)  # ~2 grid steps (megacore)
    else:
        tile_rows = _MAX_TILE_ROWS               # large pool: 1 MiB blocks
    padded_rows = _round_up(rows, tile_rows)
    return padded_rows, tile_rows


def _ema_kernel(ema_ref, p_ref, out_ref, *, momentum):
    # Always accumulate in f32: with m = 0.9997 the p*(1-m) increment is below
    # bf16 relative precision against ema, so low-precision math would stall.
    e = ema_ref[...].astype(jnp.float32)
    p = p_ref[...].astype(jnp.float32)
    out_ref[...] = (e * momentum + p * (1.0 - momentum)).astype(out_ref.dtype)


def _ema_pallas(ema_pool, packed, momentum, tile_rows):
    rows, lane = ema_pool.shape
    return pl.pallas_call(
        functools.partial(_ema_kernel, momentum=momentum),
        out_shape=jax.ShapeDtypeStruct((rows, lane), ema_pool.dtype),
        grid=(rows // tile_rows,),
        in_specs=[
            pl.BlockSpec((tile_rows, lane), lambda i: (i, 0)),
            pl.BlockSpec((tile_rows, lane), lambda i: (i, 0)),
        ],
        out_specs=pl.BlockSpec((tile_rows, lane), lambda i: (i, 0)),
        input_output_aliases={0: 0},          # update the EMA pool in place
        compiler_params=pltpu.CompilerParams(
            dimension_semantics=("parallel",),
            vmem_limit_bytes=32 * 1024 * 1024,
        ),
    )(ema_pool, packed)


@functools.partial(jax.jit, static_argnums=(2, 3), donate_argnums=(0,))
def _fused_ema_step(ema_pool, packed, momentum, tile_rows):
    return _ema_pallas(ema_pool, packed, momentum, tile_rows)


# ----------------------------------------------------------------------------
# Host-side mesh constants (init-time only; ~221 vertices for N=11).
# Building these on device was pure launch overhead -> plain numpy now.
# ----------------------------------------------------------------------------
def build_mesh_vertices_np(N: int) -> np.ndarray:
    """Uniform-square-graph vertices, already (v - 0.5) * 2 normalized."""
    g = 1.0 / float(N - 1)
    ii, jj = np.meshgrid(np.arange(N), np.arange(N), indexing="ij")
    grid_v = np.stack([jj * g, 1.0 - ii * g], axis=-1).reshape(N * N, 2)
    ic, jc = np.meshgrid(np.arange(N - 1), np.arange(N - 1), indexing="ij")
    cen_v = np.stack([jc * g + g * 0.5, 1.0 - ic * g - g * 0.5],
                     axis=-1).reshape((N - 1) * (N - 1), 2)
    v = np.concatenate([grid_v, cen_v], axis=0)
    return ((v - 0.5) * 2.0).astype(np.float32)


def build_faces_and_bounds(N: int):
    faces = []
    for i in range(N - 1):
        for j in range(N - 1):
            c = i * (N - 1) + j + N * N
            faces.append([c, i * N + j, i * N + j + 1])
            faces.append([c, i * N + j + 1, (i + 1) * N + j + 1])
            faces.append([c, (i + 1) * N + j + 1, (i + 1) * N + j])
            faces.append([c, (i + 1) * N + j, i * N + j])
    bound_verts = []
    j = N - 1
    for i in range(N // 2 - 1, 0, -1):
        bound_verts.append(i * N + j)
    i = 0
    for j in range(N - 1, 0, -1):
        bound_verts.append(i * N + j)
    j = 0
    for i in range(N - 1):
        bound_verts.append(i * N + j)
    i = N - 1
    for j in range(N - 1):
        bound_verts.append(i * N + j)
    j = N - 1
    for i in range(N - 1, N // 2 - 1, -1):
        bound_verts.append(i * N + j)
    return np.array(faces, np.int32), np.array(bound_verts, np.int32)


def build_edges(faces: np.ndarray) -> np.ndarray:
    # trimesh.base.Trimesh(...).edges == per-face directed edges (0,1),(1,2),(2,0)
    e = np.concatenate([faces[:, [0, 1]], faces[:, [1, 2]], faces[:, [2, 0]]], axis=0)
    edges = e.transpose()
    edges = np.concatenate((edges, edges[[1, 0], :]), axis=1)
    edges = np.unique(edges, axis=1)
    return edges


def reference_vertices(N: int) -> np.ndarray:
    """Direct loop port of the PyTorch build_uniform_square_graph vertices."""
    g = 1.0 / float(N - 1)
    v = np.zeros((N * N + (N - 1) * (N - 1), 2))
    for i in range(N):
        for j in range(N):
            v[i * N + j] = np.array([j * g, 1 - i * g])
            if i < N - 1 and j < N - 1:
                v[i * (N - 1) + j + N * N] = np.array(
                    [j * g + g / 2, 1 - i * g - g / 2])
    return (v - 0.5) * 2


# ----------------------------------------------------------------------------
class TutteTemplateJax:
    def __init__(self, model_cfg: dict):
        self.model_cfg = model_cfg
        self.mesh_resolution = model_cfg.get("MESH_RESOLUTION", 11)
        self.num_layers = model_cfg.get("NUM_LAYERS", 8)
        self.num_inner_layers = model_cfg.get("NUM_INNER_LAYERS", 8)
        self.radius = 1
        self.ema_momentum = 0.9997
        self.global_step = 0               # host counter (register_buffer analog)

        vertices = build_mesh_vertices_np(self.mesh_resolution)
        faces, bound_verts = build_faces_and_bounds(self.mesh_resolution)
        edges = build_edges(faces)
        self.mesh_input = {
            "vertices": jnp.asarray(vertices),            # (num_verts, 2) f32
            "edges": jnp.asarray(edges, jnp.int32),       # (2, num_edges)
            "faces": faces,
        }
        self.bound_verts = bound_verts
        self.num_edges = edges.shape[1]
        self.num_bound_verts = bound_verts.shape[0]

        # fused EMA state: one flat f32 pool covering every parameter
        self._ema_names = None
        self._ema_layout = {}       # name -> (offset, size, shape, dtype)
        self._ema_pool = None       # (rows, _LANE) f32
        self._ema_rows = 0
        self._ema_tile_rows = 0

    # -- fused EMA ------------------------------------------------------------
    def _init_ema_layout(self, params: dict):
        self._ema_names = list(params.keys())
        off = 0
        for name in self._ema_names:
            p = params[name]
            size = int(np.prod(p.shape)) if len(p.shape) else 1
            self._ema_layout[name] = (off, size, tuple(p.shape), p.dtype)
            off += size
        self._ema_rows, self._ema_tile_rows = _choose_tiling(off)

    def _pack_params(self, params: dict) -> jnp.ndarray:
        flats = [jnp.ravel(params[n]).astype(jnp.float32) for n in self._ema_names]
        flat = jnp.concatenate(flats, axis=0)
        pad = self._ema_rows * _LANE - flat.shape[0]
        if pad:
            flat = jnp.concatenate([flat, jnp.zeros((pad,), jnp.float32)], axis=0)
        return flat.reshape(self._ema_rows, _LANE)

    def update_ema(self, params: dict):
        if self._ema_pool is None:
            self._init_ema_layout(params)
            self._ema_pool = self._pack_params(params)    # first call: clone
        else:
            packed = self._pack_params(params)
            self._ema_pool = _fused_ema_step(             # ONE pallas_call/step
                self._ema_pool, packed, self.ema_momentum, self._ema_tile_rows)

    def get_ema(self, name: str) -> jnp.ndarray:
        off, size, shape, _ = self._ema_layout[name]
        return self._ema_pool.reshape(-1)[off:off + size].reshape(shape)

    # -- misc -----------------------------------------------------------------
    def update_global_step(self):
        self.global_step += 1                 # plain host increment (no kernel)

    def forward(self, **kwargs):
        # TODO(synk): base template's forward raises NotImplementedError in
        # PyTorch; subclasses (backbone / tutte_head) supply the real forward.
        raise NotImplementedError


# ----------------------------------------------------------------------------
if __name__ == "__main__":
    model_cfg = {"MESH_RESOLUTION": 11, "NUM_LAYERS": 8, "NUM_INNER_LAYERS": 8}
    model = TutteTemplateJax(model_cfg)

    # mesh constants match the PyTorch loop construction
    ref_v = reference_vertices(model.mesh_resolution)
    assert np.allclose(np.asarray(model.mesh_input["vertices"]), ref_v, atol=1e-6)
    assert model.mesh_input["edges"].shape[0] == 2
    assert len(model.mesh_input["faces"]) == 4 * (model.mesh_resolution - 1) ** 2
    assert model.num_bound_verts == model.bound_verts.shape[0]

    # deterministic synthetic "named parameters" with mixed ranks / dtypes
    key = jax.random.PRNGKey(0)
    keys = jax.random.split(key, 6)
    params1 = {
        "backbone.conv.weight": jax.random.normal(keys[0], (4, 4, 3, 3), jnp.float32),
        "backbone.conv.bias":   jax.random.normal(keys[1], (4,), jnp.float32),
        "backbone.fc.weight":   jax.random.normal(keys[2], (32, 300), jnp.float32),
        "head.weight":          jax.random.normal(keys[3], (256, 256), jnp.float32),
        "head.ln.scale":        jax.random.normal(keys[4], (64,), jnp.float32
                                                  ).astype(jnp.bfloat16),
    }
    noise_keys = jax.random.split(keys[5], len(params1))
    params2 = {}
    for i, (name, v) in enumerate(params1.items()):
        noise = 0.01 * jax.random.normal(noise_keys[i], v.shape, jnp.float32)
        params2[name] = (v.astype(jnp.float32) + noise).astype(v.dtype)

    m = model.ema_momentum
    model.update_ema(params1)                   # first call: clone into f32 pool
    model.update_ema(params2)                   # fused Pallas EMA step 1
    model.update_ema(params2)                   # fused Pallas EMA step 2 (in-place)
    jax.block_until_ready(model._ema_pool)

    for name in params1:
        p1 = np.asarray(params1[name].astype(jnp.float32))
        p2 = np.asarray(params2[name].astype(jnp.float32))
        ref = (p1 * m + p2 * (1.0 - m)) * m + p2 * (1.0 - m)
        got = np.asarray(model.get_ema(name))
        assert np.allclose(got, ref, atol=1e-5), f"ema mismatch for {name}"

    # global step (host counter, no kernel launch)
    model.update_global_step()
    assert model.global_step == 1

    print("KERNEL_OK")
</pallas_src>

<mosaic_0001>
module attributes {stable_mosaic.version = 11 : i64} {
  func.func @_ema_kernel(%arg0: i32, %arg1: memref<80x512xf32, #tpu.memory_space<vmem>>, %arg2: memref<80x512xf32, #tpu.memory_space<vmem>>, %arg3: memref<80x512xf32, #tpu.memory_space<vmem>>) attributes {dimension_semantics = [#tpu.dimension_semantics<parallel>], iteration_bounds = array<i64: 2>, scalar_prefetch = 0 : i64, scratch_operands = 0 : i64, tpu.core_type = #tpu.core_type<tc>, window_params = [{transform_indices = @transform_0, window_bounds = array<i64: 80, 512>}, {transform_indices = @transform_1, window_bounds = array<i64: 80, 512>}, {transform_indices = @transform_2, window_bounds = array<i64: 80, 512>}]} {
    %c0 = arith.constant 0 : index
    %c0_0 = arith.constant 0 : index
    %0 = vector.load %arg1[%c0, %c0_0] : memref<80x512xf32, #tpu.memory_space<vmem>>, vector<80x512xf32>
    %c0_1 = arith.constant 0 : index
    %c0_2 = arith.constant 0 : index
    %1 = vector.load %arg2[%c0_1, %c0_2] : memref<80x512xf32, #tpu.memory_space<vmem>>, vector<80x512xf32>
    %cst = arith.constant 9.997000e-01 : f32
    %2 = vector.broadcast %cst : f32 to vector<80x512xf32>
    %3 = arith.mulf %0, %2 : vector<80x512xf32>
    %cst_3 = arith.constant 3.000000e-04 : f32
    %4 = vector.broadcast %cst_3 : f32 to vector<80x512xf32>
    %5 = arith.mulf %1, %4 : vector<80x512xf32>
    %6 = arith.addf %3, %5 : vector<80x512xf32>
    %c0_4 = arith.constant 0 : index
    %c0_5 = arith.constant 0 : index
    %7 = vector.load %arg3[%c0_4, %c0_5] : memref<80x512xf32, #tpu.memory_space<vmem>>, vector<80x512xf32>
    tpu.vector_store %arg3[%c0_4, %c0_5], %6 {strides = array<i32>} : memref<80x512xf32, #tpu.memory_space<vmem>>, vector<80x512xf32>,
    return
  }
  func.func @transform_0(%arg0: i32) -> (i32, i32) {
    %c0_i32 = arith.constant 0 : i32
    %c0_i32_0 = arith.constant 0 : i32
    return %arg0, %c0_i32 : i32, i32
  }
  func.func @transform_1(%arg0: i32) -> (i32, i32) {
    %c0_i32 = arith.constant 0 : i32
    %c0_i32_0 = arith.constant 0 : i32
    return %arg0, %c0_i32 : i32, i32
  }
  func.func @transform_2(%arg0: i32) -> (i32, i32) {
    %c0_i32 = arith.constant 0 : i32
    %c0_i32_0 = arith.constant 0 : i32
    return %arg0, %c0_i32 : i32, i32
  }
}

</mosaic_0001>

<llo_original>
// kernel: _fused_ema_step.1
$region0: #{_fused_ema_step.1}
  #allocation0 [shape = 'u32[]', space=smem, size = 0x4, offset = 0x4, fixed_abs, tag = 'smem constant byte address 0x4 - core index']
  #allocation1 [shape = 'u32[144,128]{1,0:T(1,128)}', space=vmem, size = 0x12000, scoped, tag = 'internal scratch']
  %s0 = inlined_call_operand.hbm [shape: f32[160,512], index: 0, kind: input, shape index: {}, may-alias: {0,2}]
  %s1 = inlined_call_operand.hbm [shape: f32[160,512], index: 1, kind: input, shape index: {}]
  %s2 = inlined_call_operand.hbm [shape: f32[160,512], index: 2, kind: output, shape index: {}, may-alias: {0,2}]
  %s3 = sld [smem:[#allocation0]]
  $region49: #{_fused_ema_step.1} parent=0
    _
  %s5 = ssub.s32 1, %s3
  %s6 = scalar_select 0, %s5, %s3
  $region1: #{_fused_ema_step.1} parent=0
    #allocation2 [shape = 'u8[327680]{0}', space=vmem, size = 0x50000, scoped, tag = 'input window, operand 0']
    #allocation3 [shape = 's32[2]{0}', space=sflag, size = 0x8, scoped, tag = 'scoped memory for _fused_ema_step.1']
    #allocation4 [shape = 's32[2]{0}', space=sflag, size = 0x8, scoped, tag = 'scoped memory for _fused_ema_step.1']
    #allocation5 [shape = 'u8[327680]{0}', space=vmem, size = 0x50000, scoped, tag = 'input window, operand 1']
    #allocation6 [shape = 's32[2]{0}', space=sflag, size = 0x8, scoped, tag = 'scoped memory for _fused_ema_step.1']
    #allocation7 [shape = 'u8[327680]{0}', space=vmem, size = 0x50000, scoped, tag = 'output window, operand 0']
    %7 = vsyncpa [#allocation3], 0
    %s8 = scalar_lea.sflag [#allocation3], 1
    %9 = vsyncpa %s8, 0
    %10 = vsyncpa [#allocation6], 0
    %s11 = scalar_lea.sflag [#allocation6], 1
    %12 = vsyncpa %s11, 0
    %13 = vsyncpa [#allocation4], 0
    %s14 = scalar_lea.sflag [#allocation4], 1
    %15 = vsyncpa %s14, 0
    loop: start=0, step=1, limit=4
    $region2: #{_fused_ema_step.1} parent=1 // loop_pre_header
      _
    $region3: #{_fused_ema_step.1} parent=1 // loop_header
      %s17 = sphi 0, %s21
      %p18 = scmp.ge.s32.totalorder %s17, 4
      %s27 = sphi 0, %s29
      %s30 = sphi 0, %s27
      %s31 = sphi 0, %s30
      %s47 = sphi 0, %s31
      %s53 = sphi 0, %s55
      %s56 = sphi 0, %s53
      %s57 = sphi 0, %s56
      %s73 = sphi 0, %s57
      %s79 = sphi 0, %s81
      %s82 = sphi 0, %s79
      %s83 = sphi 0, %s82
      %s99 = sphi 0, %s83
    $region4: #{_fused_ema_step.1} parent=1 // loop_header_branch
      %20 = sbr.rel (%p18) target = $region8
    $region5: #{_fused_ema_step.1} parent=1 // loop_body
      %s22 = ssub.s32 %s17, 1
      %s23 = ssub.s32 %s17, 2
      %s24 = sadd.s32 %s17, 1
      %s25 = ssub.s32 %s17, %s24
      %p26 = scmp.eq.s32.totalorder %s25, 0
      %s28 = sadd.s32 %s27, 1
      %s29 = scalar_select %p26, %s27, %s28
      %p32 = pneg %p26
      %p33 = scmp.eq.s32.totalorder %s17, 1
      %p34 = por %p32, %p33
      %p35 = scmp.ne.s32.totalorder %s27, %s30
      %p36 = scmp.eq.s32.totalorder %s17, 0
      %p37 = por %p35, %p36
      %p38 = scmp.ne.s32.totalorder %s27, %s30
      %p39 = scmp.eq.s32.totalorder %s22, 1
      %p40 = por %p38, %p39
      %p41 = scmp.ne.s32.totalorder %s30, %s31
      %p42 = scmp.eq.s32.totalorder %s22, 0
      %p43 = por %p41, %p42
      %p44 = scmp.ne.s32.totalorder %s30, %s31
      %p45 = scmp.eq.s32.totalorder %s23, 1
      %p46 = por %p44, %p45
      %p48 = scmp.ne.s32.totalorder %s31, %s47
      %p49 = scmp.eq.s32.totalorder %s23, 0
      %p50 = por %p48, %p49
      %s51 = ssub.s32 %s17, %s24
      %p52 = scmp.eq.s32.totalorder %s51, 0
      %s54 = sadd.s32 %s53, 1
      %s55 = scalar_select %p52, %s53, %s54
      %p58 = pneg %p52
      %p59 = scmp.eq.s32.totalorder %s17, 1
      %p60 = por %p58, %p59
      %p61 = scmp.ne.s32.totalorder %s53, %s56
      %p62 = scmp.eq.s32.totalorder %s17, 0
      %p63 = por %p61, %p62
      %p64 = scmp.ne.s32.totalorder %s53, %s56
      %p65 = scmp.eq.s32.totalorder %s22, 1
      %p66 = por %p64, %p65
      %p67 = scmp.ne.s32.totalorder %s56, %s57
      %p68 = scmp.eq.s32.totalorder %s22, 0
      %p69 = por %p67, %p68
      %p70 = scmp.ne.s32.totalorder %s56, %s57
      %p71 = scmp.eq.s32.totalorder %s23, 1
      %p72 = por %p70, %p71
      %p74 = scmp.ne.s32.totalorder %s57, %s73
      %p75 = scmp.eq.s32.totalorder %s23, 0
      %p76 = por %p74, %p75
      %s77 = ssub.s32 %s17, %s24
      %p78 = scmp.eq.s32.totalorder %s77, 0
      %s80 = sadd.s32 %s79, 1
      %s81 = scalar_select %p78, %s79, %s80
      %p84 = pneg %p78
      %p85 = scmp.eq.s32.totalorder %s17, 1
      %p86 = por %p84, %p85
      %p87 = scmp.ne.s32.totalorder %s79, %s82
      %p88 = scmp.eq.s32.totalorder %s17, 0
      %p89 = por %p87, %p88
      %p90 = scmp.ne.s32.totalorder %s79, %s82
      %p91 = scmp.eq.s32.totalorder %s22, 1
      %p92 = por %p90, %p91
      %p93 = scmp.ne.s32.totalorder %s82, %s83
      %p94 = scmp.eq.s32.totalorder %s22, 0
      %p95 = por %p93, %p94
      %p96 = scmp.ne.s32.totalorder %s82, %s83
      %p97 = scmp.eq.s32.totalorder %s23, 1
      %p98 = por %p96, %p97
      %p100 = scmp.ne.s32.totalorder %s83, %s99
      %p101 = scmp.eq.s32.totalorder %s23, 0
      %p102 = por %p100, %p101
      %p103 = scmp.le.s32.totalorder 1, %s17
      %p104 = scmp.lt.s32.totalorder %s17, 3
      %p105 = pnand %p103, %p104
      %p106 = pneg %p105
      // Predicated region
      $region9: #{_fused_ema_step.1} parent=5 // pred_check
        _
      $region10: #{_fused_ema_step.1} parent=5 // pred_check_branch
        %108 = sbr.rel (%p105) target = $region12
      $region11: #{_fused_ema_step.1} parent=5 // pred_region
        %s109 = ssub.s32 %s17, 1
      $region12: #{_fused_ema_step.1} parent=5 // pred_fallthru
        _
      %p110 = scmp.lt.s32.totalorder %s17, 2
      // Predicated region
      $region13: #{_fused_ema_step.1} parent=5 // pred_check
        %p111 = pneg %p110
      $region14: #{_fused_ema_step.1} parent=5 // pred_check_branch
        %113 = sbr.rel (%p111) target = $region16
      $region15: #{_fused_ema_step.1} parent=5 // pred_region
        // Predicated region
        $region17: #{_fused_ema_step.1} parent=15 // pred_check
          %p114 = pneg %p37
        $region18: #{_fused_ema_step.1} parent=15 // pred_check_branch
          %116 = sbr.rel (%p114) target = $region20
        $region19: #{_fused_ema_step.1} parent=15 // pred_region
          %s117 = sand.u32 %s27, 1
          %s118 = scalar_lea.sflag [#allocation3], %s117
          %s119 = sand.u32 %s27, 1
          %s120 = smul.addr %s119, 320
          %s121 = scalar_lea.vmem [#allocation2], %s120
          %s122 = smul.u32 10, %s17
          %s124 = ssub.s32 5120, 5120
          %125 = vsyncadd %s118, %s124
          %s126 = smul.addr %s122, 4
          %s127 = smul.addr %s126, 128
          %s128 = scalar_lea.hbm %s0, %s127
          %s129 = sshll.u32 %s121, 4
          %s130 = int_to_ptr.vmem [resolvable:$true] %s129
          %135 = dma.hbm_to_vmem [thread:$0]  %s128, 5120, %s130, %s118, 512, 512, 32
        $region20: #{_fused_ema_step.1} parent=15 // pred_fallthru
          _
        // Predicated region
        $region21: #{_fused_ema_step.1} parent=15 // pred_check
          %p136 = pneg %p63
        $region22: #{_fused_ema_step.1} parent=15 // pred_check_branch
          %138 = sbr.rel (%p136) target = $region24
        $region23: #{_fused_ema_step.1} parent=15 // pred_region
          %s139 = sand.u32 %s53, 1
          %s140 = scalar_lea.sflag [#allocation6], %s139
          %s141 = sand.u32 %s53, 1
          %s142 = smul.addr %s141, 320
          %s143 = scalar_lea.vmem [#allocation5], %s142
          %s144 = smul.u32 10, %s17
          %s146 = ssub.s32 5120, 5120
          %147 = vsyncadd %s140, %s146
          %s148 = smul.addr %s144, 4
          %s149 = smul.addr %s148, 128
          %s150 = scalar_lea.hbm %s1, %s149
          %s151 = sshll.u32 %s143, 4
          %s152 = int_to_ptr.vmem [resolvable:$true] %s151
          %157 = dma.hbm_to_vmem [thread:$0]  %s150, 5120, %s152, %s140, 512, 512, 32
        $region24: #{_fused_ema_step.1} parent=15 // pred_fallthru
          _
      $region16: #{_fused_ema_step.1} parent=5 // pred_fallthru
        _
      %p158 = scmp.le.s32.totalorder 1, %s17
      %p159 = scmp.lt.s32.totalorder %s17, 3
      %p160 = pnand %p158, %p159
      %p161 = pneg %p160
      // Predicated region
      $region25: #{_fused_ema_step.1} parent=5 // pred_check
        _
      $region26: #{_fused_ema_step.1} parent=5 // pred_check_branch
        %163 = sbr.rel (%p160) target = $region28
      $region27: #{_fused_ema_step.1} parent=5 // pred_region
        %s164 = ssub.s32 %s17, 1
        %s165 = sand.u32 %s30, 1
        %s166 = scalar_lea.sflag [#allocation3], %s165
        %s167 = sand.u32 %s30, 1
        %s168 = smul.addr %s167, 320
        %s169 = scalar_lea.vmem [#allocation2], %s168
        // Predicated region
        $region29: #{_fused_ema_step.1} parent=27 // pred_check
          %p170 = pneg %p43
        $region30: #{_fused_ema_step.1} parent=27 // pred_check_branch
          %172 = sbr.rel (%p170) target = $region32
        $region31: #{_fused_ema_step.1} parent=27 // pred_region
          %173 = dma.done %s166, 5120
        $region32: #{_fused_ema_step.1} parent=27 // pred_fallthru
          _
        %s174 = sand.u32 %s56, 1
        %s175 = scalar_lea.sflag [#allocation6], %s174
        %s176 = sand.u32 %s56, 1
        %s177 = smul.addr %s176, 320
        %s178 = scalar_lea.vmem [#allocation5], %s177
        // Predicated region
        $region33: #{_fused_ema_step.1} parent=27 // pred_check
          %p179 = pneg %p69
        $region34: #{_fused_ema_step.1} parent=27 // pred_check_branch
          %181 = sbr.rel (%p179) target = $region36
        $region35: #{_fused_ema_step.1} parent=27 // pred_region
          %182 = dma.done %s175, 5120
        $region36: #{_fused_ema_step.1} parent=27 // pred_fallthru
          _
        %s183 = sand.u32 %s30, 1
        %s184 = scalar_lea.sflag [#allocation3], %s183
        %s185 = sand.u32 %s30, 1
        %s186 = smul.addr %s185, 320
        %s187 = scalar_lea.vmem [#allocation2], %s186
        %p188 = pneg %p43
        %p189 = pneg %p40
        %s190 = sand.u32 %s56, 1
        %s191 = scalar_lea.sflag [#allocation6], %s190
        %s192 = sand.u32 %s56, 1
        %s193 = smul.addr %s192, 320
        %s194 = scalar_lea.vmem [#allocation5], %s193
        %p195 = pneg %p69
        %p196 = pneg %p66
        %p197 = pneg %p95
        %p198 = pneg %p92
        %s199 = sand.u32 %s82, 1
        %s200 = scalar_lea.sflag [#allocation4], %s199
        %s201 = sand.u32 %s82, 1
        %s202 = smul.addr %s201, 320
        %s203 = scalar_lea.vmem [#allocation7], %s202
        %s204 = smul.u32 10, %s22
        %s205 = smul.u32 10, %s22
        %s206 = smul.u32 10, %s22
        %v207 = vld [vmem:[%s169] sm:$0xff]
        %v208 = vld [vmem:[%s169 + $0x8] sm:$0xff]
        %v209 = vld [vmem:[%s169 + $0x10] sm:$0xff]
        %v210 = vld [vmem:[%s169 + $0x18] sm:$0xff]
        %v211 = vld [vmem:[%s169 + $0x20] sm:$0xff]
        %v212 = vld [vmem:[%s169 + $0x28] sm:$0xff]
        %v213 = vld [vmem:[%s169 + $0x30] sm:$0xff]
        %v214 = vld [vmem:[%s169 + $0x38] sm:$0xff]
        %v215 = vld [vmem:[%s169 + $0x40] sm:$0xff]
        %v216 = vld [vmem:[%s169 + $0x48] sm:$0xff]
        %v217 = vld [vmem:[%s169 + $0x50] sm:$0xff]
        %v218 = vld [vmem:[%s169 + $0x58] sm:$0xff]
        %v219 = vld [vmem:[%s169 + $0x60] sm:$0xff]
        %v220 = vld [vmem:[%s169 + $0x68] sm:$0xff]
        %v221 = vld [vmem:[%s169 + $0x70] sm:$0xff]
        %v222 = vld [vmem:[%s169 + $0x78] sm:$0xff]
        %v223 = vld [vmem:[%s169 + $0x80] sm:$0xff]
        %v224 = vld [vmem:[%s169 + $0x88] sm:$0xff]
        %v225 = vld [vmem:[%s169 + $0x90] sm:$0xff]
        %v226 = vld [vmem:[%s169 + $0x98] sm:$0xff]
        %v227 = vld [vmem:[%s169 + $0xa0] sm:$0xff]
        %v228 = vld [vmem:[%s169 + $0xa8] sm:$0xff]
        %v229 = vld [vmem:[%s169 + $0xb0] sm:$0xff]
        %v230 = vld [vmem:[%s169 + $0xb8] sm:$0xff]
        %v231 = vld [vmem:[%s169 + $0xc0] sm:$0xff]
        %v232 = vld [vmem:[%s169 + $0xc8] sm:$0xff]
        %v233 = vld [vmem:[%s169 + $0xd0] sm:$0xff]
        %v234 = vld [vmem:[%s169 + $0xd8] sm:$0xff]
        %v235 = vld [vmem:[%s169 + $0xe0] sm:$0xff]
        %v236 = vld [vmem:[%s169 + $0xe8] sm:$0xff]
        %v237 = vld [vmem:[%s169 + $0xf0] sm:$0xff]
        %v238 = vld [vmem:[%s169 + $0xf8] sm:$0xff]
        %v239 = vld [vmem:[%s169 + $0x100] sm:$0xff]
        %v240 = vld [vmem:[%s169 + $0x108] sm:$0xff]
        %v241 = vld [vmem:[%s169 + $0x110] sm:$0xff]
        %v242 = vld [vmem:[%s169 + $0x118] sm:$0xff]
        %v243 = vld [vmem:[%s169 + $0x120] sm:$0xff]
        %v244 = vld [vmem:[%s169 + $0x128] sm:$0xff]
        %v245 = vld [vmem:[%s169 + $0x130] sm:$0xff]
        %v246 = vld [vmem:[%s169 + $0x138] sm:$0xff]
        %v247 = vld [vmem:[%s178] sm:$0xff]
        %v248 = vld [vmem:[%s178 + $0x8] sm:$0xff]
        %v249 = vld [vmem:[%s178 + $0x10] sm:$0xff]
        %v250 = vld [vmem:[%s178 + $0x18] sm:$0xff]
        %v251 = vld [vmem:[%s178 + $0x20] sm:$0xff]
        %v252 = vld [vmem:[%s178 + $0x28] sm:$0xff]
        %v253 = vld [vmem:[%s178 + $0x30] sm:$0xff]
        %v254 = vld [vmem:[%s178 + $0x38] sm:$0xff]
        %v255 = vld [vmem:[%s178 + $0x40] sm:$0xff]
        %v256 = vld [vmem:[%s178 + $0x48] sm:$0xff]
        %v257 = vld [vmem:[%s178 + $0x50] sm:$0xff]
        %v258 = vld [vmem:[%s178 + $0x58] sm:$0xff]
        %v259 = vld [vmem:[%s178 + $0x60] sm:$0xff]
        %v260 = vld [vmem:[%s178 + $0x68] sm:$0xff]
        %v261 = vld [vmem:[%s178 + $0x70] sm:$0xff]
        %v262 = vld [vmem:[%s178 + $0x78] sm:$0xff]
        %v263 = vld [vmem:[%s178 + $0x80] sm:$0xff]
        %v264 = vld [vmem:[%s178 + $0x88] sm:$0xff]
        %v265 = vld [vmem:[%s178 + $0x90] sm:$0xff]
        %v266 = vld [vmem:[%s178 + $0x98] sm:$0xff]
        %v267 = vld [vmem:[%s178 + $0xa0] sm:$0xff]
        %v268 = vld [vmem:[%s178 + $0xa8] sm:$0xff]
        %v269 = vld [vmem:[%s178 + $0xb0] sm:$0xff]
        %v270 = vld [vmem:[%s178 + $0xb8] sm:$0xff]
        %v271 = vld [vmem:[%s178 + $0xc0] sm:$0xff]
        %v272 = vld [vmem:[%s178 + $0xc8] sm:$0xff]
        %v273 = vld [vmem:[%s178 + $0xd0] sm:$0xff]
        %v274 = vld [vmem:[%s178 + $0xd8] sm:$0xff]
        %v275 = vld [vmem:[%s178 + $0xe0] sm:$0xff]
        %v276 = vld [vmem:[%s178 + $0xe8] sm:$0xff]
        %v277 = vld [vmem:[%s178 + $0xf0] sm:$0xff]
        %v278 = vld [vmem:[%s178 + $0xf8] sm:$0xff]
        %v279 = vld [vmem:[%s178 + $0x100] sm:$0xff]
        %v280 = vld [vmem:[%s178 + $0x108] sm:$0xff]
        %v281 = vld [vmem:[%s178 + $0x110] sm:$0xff]
        %v282 = vld [vmem:[%s178 + $0x118] sm:$0xff]
        %v283 = vld [vmem:[%s178 + $0x120] sm:$0xff]
        %v284 = vld [vmem:[%s178 + $0x128] sm:$0xff]
        %v285 = vld [vmem:[%s178 + $0x130] sm:$0xff]
        %v286 = vld [vmem:[%s178 + $0x138] sm:$0xff]
        %v287 = vmul.f32 %v207, 0.9997
        %v288 = vmul.f32 %v208, 0.9997
        %v289 = vmul.f32 %v209, 0.9997
        %v290 = vmul.f32 %v210, 0.9997
        %v291 = vmul.f32 %v211, 0.9997
        %v292 = vmul.f32 %v212, 0.9997
        %v293 = vmul.f32 %v213, 0.9997
        %v294 = vmul.f32 %v214, 0.9997
        %v295 = vmul.f32 %v215, 0.9997
        %v296 = vmul.f32 %v216, 0.9997
        %v297 = vmul.f32 %v217, 0.9997
        %v298 = vmul.f32 %v218, 0.9997
        %v299 = vmul.f32 %v219, 0.9997
        %v300 = vmul.f32 %v220, 0.9997
        %v301 = vmul.f32 %v221, 0.9997
        %v302 = vmul.f32 %v222, 0.9997
        %v303 = vmul.f32 %v223, 0.9997
        %v304 = vmul.f32 %v224, 0.9997
        %v305 = vmul.f32 %v225, 0.9997
        %v306 = vmul.f32 %v226, 0.9997
        %v307 = vmul.f32 %v227, 0.9997
        %v308 = vmul.f32 %v228, 0.9997
        %v309 = vmul.f32 %v229, 0.9997
        %v310 = vmul.f32 %v230, 0.9997
        %v311 = vmul.f32 %v231, 0.9997
        %v312 = vmul.f32 %v232, 0.9997
        %v313 = vmul.f32 %v233, 0.9997
        %v314 = vmul.f32 %v234, 0.9997
        %v315 = vmul.f32 %v235, 0.9997
        %v316 = vmul.f32 %v236, 0.9997
        %v317 = vmul.f32 %v237, 0.9997
        %v318 = vmul.f32 %v238, 0.9997
        %v319 = vmul.f32 %v239, 0.9997
        %v320 = vmul.f32 %v240, 0.9997
        %v321 = vmul.f32 %v241, 0.9997
        %v322 = vmul.f32 %v242, 0.9997
        %v323 = vmul.f32 %v243, 0.9997
        %v324 = vmul.f32 %v244, 0.9997
        %v325 = vmul.f32 %v245, 0.9997
        %v326 = vmul.f32 %v246, 0.9997
        %v327 = vmul.f32 %v247, 0.0003
        %v328 = vmul.f32 %v248, 0.0003
        %v329 = vmul.f32 %v249, 0.0003
        %v330 = vmul.f32 %v250, 0.0003
        %v331 = vmul.f32 %v251, 0.0003
        %v332 = vmul.f32 %v252, 0.0003
        %v333 = vmul.f32 %v253, 0.0003
        %v334 = vmul.f32 %v254, 0.0003
        %v335 = vmul.f32 %v255, 0.0003
        %v336 = vmul.f32 %v256, 0.0003
        %v337 = vmul.f32 %v257, 0.0003
        %v338 = vmul.f32 %v258, 0.0003
        %v339 = vmul.f32 %v259, 0.0003
        %v340 = vmul.f32 %v260, 0.0003
        %v341 = vmul.f32 %v261, 0.0003
        %v342 = vmul.f32 %v262, 0.0003
        %v343 = vmul.f32 %v263, 0.0003
        %v344 = vmul.f32 %v264, 0.0003
        %v345 = vmul.f32 %v265, 0.0003
        %v346 = vmul.f32 %v266, 0.0003
        %v347 = vmul.f32 %v267, 0.0003
        %v348 = vmul.f32 %v268, 0.0003
        %v349 = vmul.f32 %v269, 0.0003
        %v350 = vmul.f32 %v270, 0.0003
        %v351 = vmul.f32 %v271, 0.0003
        %v352 = vmul.f32 %v272, 0.0003
        %v353 = vmul.f32 %v273, 0.0003
        %v354 = vmul.f32 %v274, 0.0003
        %v355 = vmul.f32 %v275, 0.0003
        %v356 = vmul.f32 %v276, 0.0003
        %v357 = vmul.f32 %v277, 0.0003
        %v358 = vmul.f32 %v278, 0.0003
        %v359 = vmul.f32 %v279, 0.0003
        %v360 = vmul.f32 %v280, 0.0003
        %v361 = vmul.f32 %v281, 0.0003
        %v362 = vmul.f32 %v282, 0.0003
        %v363 = vmul.f32 %v283, 0.0003
        %v364 = vmul.f32 %v284, 0.0003
        %v365 = vmul.f32 %v285, 0.0003
        %v366 = vmul.f32 %v286, 0.0003
        %v367 = vadd.f32 %v287, %v327
        %v368 = vadd.f32 %v288, %v328
        %v369 = vadd.f32 %v289, %v329
        %v370 = vadd.f32 %v290, %v330
        %v371 = vadd.f32 %v291, %v331
        %v372 = vadd.f32 %v292, %v332
        %v373 = vadd.f32 %v293, %v333
        %v374 = vadd.f32 %v294, %v334
        %v375 = vadd.f32 %v295, %v335
        %v376 = vadd.f32 %v296, %v336
        %v377 = vadd.f32 %v297, %v337
        %v378 = vadd.f32 %v298, %v338
        %v379 = vadd.f32 %v299, %v339
        %v380 = vadd.f32 %v300, %v340
        %v381 = vadd.f32 %v301, %v341
        %v382 = vadd.f32 %v302, %v342
        %v383 = vadd.f32 %v303, %v343
        %v384 = vadd.f32 %v304, %v344
        %v385 = vadd.f32 %v305, %v345
        %v386 = vadd.f32 %v306, %v346
        %v387 = vadd.f32 %v307, %v347
        %v388 = vadd.f32 %v308, %v348
        %v389 = vadd.f32 %v309, %v349
        %v390 = vadd.f32 %v310, %v350
        %v391 = vadd.f32 %v311, %v351
        %v392 = vadd.f32 %v312, %v352
        %v393 = vadd.f32 %v313, %v353
        %v394 = vadd.f32 %v314, %v354
        %v395 = vadd.f32 %v315, %v355
        %v396 = vadd.f32 %v316, %v356
        %v397 = vadd.f32 %v317, %v357
        %v398 = vadd.f32 %v318, %v358
        %v399 = vadd.f32 %v319, %v359
        %v400 = vadd.f32 %v320, %v360
        %v401 = vadd.f32 %v321, %v361
        %v402 = vadd.f32 %v322, %v362
        %v403 = vadd.f32 %v323, %v363
        %v404 = vadd.f32 %v324, %v364
        %v405 = vadd.f32 %v325, %v365
        %v406 = vadd.f32 %v326, %v366
        %407 = vst [vmem:[%s203] sm:$0xff] %v367
        %408 = vst [vmem:[%s203 + $0x8] sm:$0xff] %v368
        %409 = vst [vmem:[%s203 + $0x10] sm:$0xff] %v369
        %410 = vst [vmem:[%s203 + $0x18] sm:$0xff] %v370
        %411 = vst [vmem:[%s203 + $0x20] sm:$0xff] %v371
        %412 = vst [vmem:[%s203 + $0x28] sm:$0xff] %v372
        %413 = vst [vmem:[%s203 + $0x30] sm:$0xff] %v373
        %414 = vst [vmem:[%s203 + $0x38] sm:$0xff] %v374
        %415 = vst [vmem:[%s203 + $0x40] sm:$0xff] %v375
        %416 = vst [vmem:[%s203 + $0x48] sm:$0xff] %v376
        %417 = vst [vmem:[%s203 + $0x50] sm:$0xff] %v377
        %418 = vst [vmem:[%s203 + $0x58] sm:$0xff] %v378
        %419 = vst [vmem:[%s203 + $0x60] sm:$0xff] %v379
        %420 = vst [vmem:[%s203 + $0x68] sm:$0xff] %v380
        %421 = vst [vmem:[%s203 + $0x70] sm:$0xff] %v381
        %422 = vst [vmem:[%s203 + $0x78] sm:$0xff] %v382
        %423 = vst [vmem:[%s203 + $0x80] sm:$0xff] %v383
        %424 = vst [vmem:[%s203 + $0x88] sm:$0xff] %v384
        %425 = vst [vmem:[%s203 + $0x90] sm:$0xff] %v385
        %426 = vst [vmem:[%s203 + $0x98] sm:$0xff] %v386
        %427 = vst [vmem:[%s203 + $0xa0] sm:$0xff] %v387
        %428 = vst [vmem:[%s203 + $0xa8] sm:$0xff] %v388
        %429 = vst [vmem:[%s203 + $0xb0] sm:$0xff] %v389
        %430 = vst [vmem:[%s203 + $0xb8] sm:$0xff] %v390
        %431 = vst [vmem:[%s203 + $0xc0] sm:$0xff] %v391
        %432 = vst [vmem:[%s203 + $0xc8] sm:$0xff] %v392
        %433 = vst [vmem:[%s203 + $0xd0] sm:$0xff] %v393
        %434 = vst [vmem:[%s203 + $0xd8] sm:$0xff] %v394
        %435 = vst [vmem:[%s203 + $0xe0] sm:$0xff] %v395
        %436 = vst [vmem:[%s203 + $0xe8] sm:$0xff] %v396
        %437 = vst [vmem:[%s203 + $0xf0] sm:$0xff] %v397
        %438 = vst [vmem:[%s203 + $0xf8] sm:$0xff] %v398
        %439 = vst [vmem:[%s203 + $0x100] sm:$0xff] %v399
        %440 = vst [vmem:[%s203 + $0x108] sm:$0xff] %v400
        %441 = vst [vmem:[%s203 + $0x110] sm:$0xff] %v401
        %442 = vst [vmem:[%s203 + $0x118] sm:$0xff] %v402
        %443 = vst [vmem:[%s203 + $0x120] sm:$0xff] %v403
        %444 = vst [vmem:[%s203 + $0x128] sm:$0xff] %v404
        %445 = vst [vmem:[%s203 + $0x130] sm:$0xff] %v405
        %446 = vst [vmem:[%s203 + $0x138] sm:$0xff] %v406
        %s447 = sand.u32 %s82, 1
        %s448 = scalar_lea.sflag [#allocation4], %s447
        %s449 = sand.u32 %s82, 1
        %s450 = smul.addr %s449, 320
        %s451 = scalar_lea.vmem [#allocation7], %s450
        // Predicated region
        $region37: #{_fused_ema_step.1} parent=27 // pred_check
          %p452 = pneg %p92
        $region38: #{_fused_ema_step.1} parent=27 // pred_check_branch
          %454 = sbr.rel (%p452) target = $region40
        $region39: #{_fused_ema_step.1} parent=27 // pred_region
          %s455 = smul.u32 10, %s22
          %s457 = ssub.s32 5120, 5120
          %458 = vsyncadd %s448, %s457
          %s459 = smul.addr %s455, 4
          %s460 = smul.addr %s459, 128
          %s461 = scalar_lea.hbm %s2, %s460
          %s462 = sshll.u32 %s451, 4
          %s463 = int_to_ptr.vmem [resolvable:$true] %s462
          %468 = dma.vmem_to_hbm [thread:$0]  %s463, 5120, %s461, %s448, 512, 512, 32
        $region40: #{_fused_ema_step.1} parent=27 // pred_fallthru
          _
      $region28: #{_fused_ema_step.1} parent=5 // pred_fallthru
        _
      %p469 = scmp.le.s32.totalorder 2, %s17
      // Predicated region
      $region41: #{_fused_ema_step.1} parent=5 // pred_check
        %p470 = pneg %p469
      $region42: #{_fused_ema_step.1} parent=5 // pred_check_branch
        %472 = sbr.rel (%p470) target = $region44
      $region43: #{_fused_ema_step.1} parent=5 // pred_region
        %s473 = ssub.s32 %s17, 2
        // Predicated region
        $region45: #{_fused_ema_step.1} parent=43 // pred_check
          %p474 = pneg %p98
        $region46: #{_fused_ema_step.1} parent=43 // pred_check_branch
          %476 = sbr.rel (%p474) target = $region48
        $region47: #{_fused_ema_step.1} parent=43 // pred_region
          %s477 = sand.u32 %s83, 1
          %s478 = scalar_lea.sflag [#allocation4], %s477
          %s479 = sand.u32 %s83, 1
          %s480 = smul.addr %s479, 320
          %s481 = scalar_lea.vmem [#allocation7], %s480
          %482 = dma.done %s478, 5120
        $region48: #{_fused_ema_step.1} parent=43 // pred_fallthru
          _
      $region44: #{_fused_ema_step.1} parent=5 // pred_fallthru
        _
    $region6: #{_fused_ema_step.1} parent=1 // loop_footer
      %s21 = sadd.s32 1, %s17
    $region7: #{_fused_ema_step.1} parent=1 // loop_footer_branch
      %16 = sbr.rel target = $region3
    $region8: #{_fused_ema_step.1} parent=1 // loop_exit
      _
    %483 = vsyncpa [#allocation3], 1
    %s484 = scalar_lea.sflag [#allocation3], 1
    %485 = vsyncpa %s484, 1
    %486 = vsyncpa [#allocation6], 1
    %s487 = scalar_lea.sflag [#allocation6], 1
    %488 = vsyncpa %s487, 1
    %489 = vsyncpa [#allocation4], 1
    %s490 = scalar_lea.sflag [#allocation4], 1
    %491 = vsyncpa %s490, 1

</llo_original>
